<compile_context>
chip_gen: v6e
topology: v6e:2x2x1
jax: 0.10.0
libtpu: 0.0.40
codegen_flags: <defaults>
</compile_context>

<pallas_src>
import functools

import numpy as np

import jax
import jax.numpy as jnp
from jax.experimental import pallas as pl
from jax.experimental.pallas import tpu as pltpu


# ---------------------------------------------------------------------------
# Trace-time constant builders (plain numpy, tiny).
# ---------------------------------------------------------------------------

def _linear_interp_matrix(out_size, in_size):
    """1-D interpolation matrix A (out,in) for bilinear, align_corners=True."""
    A = np.zeros((out_size, in_size), np.float32)
    if in_size == 1 or out_size == 1:
        A[:, 0] = 1.0
        return A
    for i in range(out_size):
        src = i * (in_size - 1) / (out_size - 1)
        i0 = min(int(np.floor(src)), in_size - 1)
        i1 = min(i0 + 1, in_size - 1)
        f = src - i0
        A[i, i0] += 1.0 - f
        A[i, i1] += f
    return A


def _upsample_pad_matrix(H1, W1, H2, W2):
    """(H1*W1, H2*W2) matrix M s.t. flat(pad(upsample2x(img))) = flat(img) @ M,
    matching nn.Upsample(scale_factor=2, bilinear, align_corners=True) followed
    by F.pad([dX//2, dX-dX//2, dY//2, dY-dY//2]) with zeros."""
    Hu, Wu = 2 * H1, 2 * W1
    Ah = _linear_interp_matrix(Hu, H1)            # (Hu, H1)
    Aw = _linear_interp_matrix(Wu, W1)            # (Wu, W1)
    top = (H2 - Hu) // 2
    left = (W2 - Wu) // 2
    M = np.zeros((H1 * W1, H2 * W2), np.float32)
    for h2 in range(H2):
        hu = h2 - top
        if hu < 0 or hu >= Hu:
            continue
        for w2 in range(W2):
            wu = w2 - left
            if wu < 0 or wu >= Wu:
                continue
            M[:, h2 * W2 + w2] = np.outer(Ah[hu], Aw[wu]).reshape(-1)
    return M


def _tap_masks(H, W):
    """(9, H*W) 0/1 masks: masks[(dy+1)*3+(dx+1), h*W+w] == 1 iff (h+dy, w+dx)
    lies inside the image (zero padding of a 'same' 3x3 conv); also prevents a
    flattened lane roll from wrapping across image rows / images."""
    hh, ww = np.meshgrid(np.arange(H), np.arange(W), indexing="ij")
    hh = hh.reshape(-1)
    ww = ww.reshape(-1)
    m = np.zeros((9, H * W), np.float32)
    for dy in (-1, 0, 1):
        for dx in (-1, 0, 1):
            k = (dy + 1) * 3 + (dx + 1)
            ok = (hh + dy >= 0) & (hh + dy < H) & (ww + dx >= 0) & (ww + dx < W)
            m[k] = ok.astype(np.float32)
    return m


def _fold_bn(w, gamma, beta, mean, var, eps):
    """Fold inference-mode BatchNorm2d into the bias-free conv preceding it."""
    scale = gamma / jnp.sqrt(var + eps)                     # (Cout,)
    w_f = (w * scale[:, None, None, None]).astype(jnp.float32)   # (Cout,Cin,3,3)
    b_f = (beta - mean * scale).astype(jnp.float32)              # (Cout,)
    return w_f, b_f


def _block_diag_weights(wf, nb, split=None):
    """Expand folded conv weights (Cout, Cin, 3, 3) to the per-grid-step
    im2col matrix W_big (nb*Cout, 9*nb*Cin).

    The in-kernel patch slab for tap k has rows ordered:
      split is None : [b*Cin + c]                       (plain slab)
      split = C2    : [all x2 rows (b*C2+c) ; all upsampled rows (b*C1+c)]
    which matches torch.cat([x2, x1], dim=1): weight input channel c<C2 is the
    x2 part, c>=C2 the upsampled part.  kron with I_nb makes the matrix
    block-diagonal over the batch block so ONE matmul handles all nb images.
    """
    eye = jnp.eye(nb, dtype=jnp.float32)
    cols = []
    for ky in range(3):
        for kx in range(3):
            wk = wf[:, :, ky, kx]                               # (Cout, Cin)
            if split is None:
                cols.append(jnp.kron(eye, wk))
            else:
                cols.append(jnp.concatenate(
                    [jnp.kron(eye, wk[:, :split]),
                     jnp.kron(eye, wk[:, split:])], axis=1))
    return jnp.concatenate(cols, axis=1)                        # (nb*Cout, 9*nb*Cin)


# ---------------------------------------------------------------------------
# Pallas kernel.
# ---------------------------------------------------------------------------

def _up_kernel(x1_ref, x2_ref, m_ref, masks_ref,
               w1_ref, b1_ref, w2_ref, b2_ref, o_ref, *, W, P):
    # One batch block per grid step; full (Nb*C, P) slabs resident in VMEM.
    x1s = x1_ref[0].astype(jnp.float32)                        # (Nb*C1, P1)
    x2s = x2_ref[0].astype(jnp.float32)                        # (Nb*C2, P)

    # Bilinear 2x upsample (align_corners=True) + F.pad: one MXU matmul with
    # M = Nb*C1 against the precomputed interpolation matrix.
    up = jnp.dot(x1s, m_ref[...], preferred_element_type=jnp.float32)  # (Nb*C1, P)

    # torch.cat([x2, x1], dim=1): keep the simple [x2-part ; up-part] row order
    # (the block-diagonal weight matrices were built for this ordering), so no
    # per-image interleave / relayout is needed.
    cat = jnp.concatenate([x2s, up], axis=0)                   # (Nb*Cin, P)

    masks = masks_ref[...]                                     # (9, P)

    def conv_bn_relu(slab, w_ref, b_ref):
        # 'same' 3x3 conv (cross-correlation, zero pad) + folded-BN bias + ReLU
        # on a (rows, P) slab.  Per tap: one XLU lane-roll of the WHOLE slab +
        # one broadcast mask multiply (edge/wrap zeroing).  Channel contraction
        # is a single im2col-style MXU matmul with weights resident in VMEM.
        taps = []
        for dy in (-1, 0, 1):
            for dx in (-1, 0, 1):
                s = dy * W + dx
                if s == 0:
                    taps.append(slab)                          # center: in-bounds
                else:
                    k = (dy + 1) * 3 + (dx + 1)
                    rolled = pltpu.roll(slab, shift=(-s) % P, axis=1)
                    # rolled[:, p] == slab[:, (p + s) % P]; mask zeroes wraps.
                    taps.append(rolled * masks[k:k + 1, :])
        patches = jnp.concatenate(taps, axis=0)                # (9*rows, P)
        y = jnp.dot(w_ref[...], patches,
                    preferred_element_type=jnp.float32)        # (Nb*Cout_, P)
        return jnp.maximum(y + b_ref[...], 0.0)

    h = conv_bn_relu(cat, w1_ref, b1_ref)                      # (Nb*Cmid, P)
    y = conv_bn_relu(h, w2_ref, b2_ref)                        # (Nb*Cout, P)

    # Single lane/sublane-dense store of the whole output block.
    o_ref[0] = y.astype(o_ref.dtype)


def _pick_batch_block(n, max_nb=8):
    """Largest divisor of n (<= max_nb) that still leaves >= 2 grid steps, so
    the 'parallel' batch axis keeps feeding both TensorCores on v7x."""
    if n <= 1:
        return 1
    best = 1
    for nb in range(1, min(n // 2, max_nb) + 1):
        if n % nb == 0:
            best = nb
    return best


def up_forward(x1, x2, w1, bn1, w2, bn2, *, eps=1e-5, max_batch_block=8):
    """Forward of Up(bilinear=True).

    x1: (N, C1, H1, W1)   deep features (to be upsampled 2x)
    x2: (N, C2, H2, W2)   skip features
    w1: (Cmid, C1+C2, 3, 3), bn1 = (gamma, beta, running_mean, running_var)
    w2: (Cout, Cmid, 3, 3),  bn2 likewise.
    Returns (N, Cout, H2, W2).
    """
    N, C1, H1, W1 = x1.shape
    N2, C2, H2, W2 = x2.shape
    assert N == N2
    Cmid, Cout = w1.shape[0], w2.shape[0]
    Cin = C1 + C2
    assert w1.shape[1] == Cin and w2.shape[1] == Cmid
    P1, P2 = H1 * W1, H2 * W2

    Nb = _pick_batch_block(N, max_batch_block)
    G = N // Nb

    # Free row-major reshapes only: spatial on the lane axis, a block of Nb
    # images stacked on sublanes, the grid index on the leading (untiled) axis.
    x1f = x1.reshape(G, Nb * C1, P1)
    x2f = x2.reshape(G, Nb * C2, P2)

    # Trace-time constants.
    m_up = jnp.asarray(_upsample_pad_matrix(H1, W1, H2, W2))    # (P1, P2)
    masks = jnp.asarray(_tap_masks(H2, W2))                     # (9, P2)

    # Fold inference BatchNorm into the convs, then expand to per-block
    # block-diagonal im2col weight matrices (VMEM operands, not SMEM scalars).
    w1f, b1f = _fold_bn(w1, *bn1, eps)
    w2f, b2f = _fold_bn(w2, *bn2, eps)
    w1_big = _block_diag_weights(w1f, Nb, split=C2)    # (Nb*Cmid, 9*Nb*Cin)
    w2_big = _block_diag_weights(w2f, Nb)              # (Nb*Cout, 9*Nb*Cmid)
    b1_big = jnp.tile(b1f, Nb)[:, None]                # (Nb*Cmid, 1)
    b2_big = jnp.tile(b2f, Nb)[:, None]                # (Nb*Cout, 1)

    kernel = functools.partial(_up_kernel, W=W2, P=P2)

    # Right-sized VMEM request: double-buffered I/O blocks + constants +
    # in-kernel intermediates (incl. the two im2col patch slabs), 4x headroom.
    f32 = 4
    est = f32 * (
        2 * (Nb * C1 * P1 + Nb * C2 * P2 + Nb * Cout * P2)          # I/O blocks
        + 2 * (P1 * P2 + 9 * P2 + int(w1_big.size) + int(w2_big.size)
               + int(b1_big.size) + int(b2_big.size))               # constants
        + (Nb * C1 + Nb * Cin + 9 * Nb * Cin
           + Nb * Cmid + 9 * Nb * Cmid + Nb * Cout) * P2)           # intermediates
    vmem_limit = int(max(4 * 1024 * 1024, 4 * est))

    grid_spec = pltpu.PrefetchScalarGridSpec(
        num_scalar_prefetch=0,
        grid=(G,),
        in_specs=[
            pl.BlockSpec((1, Nb * C1, P1), lambda g: (g, 0, 0)),    # x1 block
            pl.BlockSpec((1, Nb * C2, P2), lambda g: (g, 0, 0)),    # x2 block
            pl.BlockSpec((P1, P2), lambda g: (0, 0)),               # upsample matrix
            pl.BlockSpec((9, P2), lambda g: (0, 0)),                # tap masks
            pl.BlockSpec(tuple(w1_big.shape), lambda g: (0, 0)),    # conv1 weights
            pl.BlockSpec(tuple(b1_big.shape), lambda g: (0, 0)),    # conv1 bias col
            pl.BlockSpec(tuple(w2_big.shape), lambda g: (0, 0)),    # conv2 weights
            pl.BlockSpec(tuple(b2_big.shape), lambda g: (0, 0)),    # conv2 bias col
        ],
        out_specs=pl.BlockSpec((1, Nb * Cout, P2), lambda g: (g, 0, 0)),
    )

    yf = pl.pallas_call(
        kernel,
        out_shape=jax.ShapeDtypeStruct((G, Nb * Cout, P2), x1.dtype),
        grid_spec=grid_spec,
        compiler_params=pltpu.CompilerParams(
            dimension_semantics=("parallel",),      # batch-block axis: both TCs
            vmem_limit_bytes=vmem_limit,
        ),
    )(x1f, x2f, m_up, masks, w1_big, b1_big, w2_big, b2_big)

    return yf.reshape(N, Cout, H2, W2)


# ---------------------------------------------------------------------------
# Pure-JAX reference (independent path) for correctness checking.
# ---------------------------------------------------------------------------

def _ref_upsample2x_align_corners(x):
    N, C, H, W = x.shape
    Ho, Wo = 2 * H, 2 * W

    def coords(out, n):
        if n == 1 or out == 1:
            return jnp.zeros((out,), jnp.float32)
        return jnp.arange(out, dtype=jnp.float32) * ((n - 1) / (out - 1))

    sh, sw = coords(Ho, H), coords(Wo, W)
    h0 = jnp.floor(sh).astype(jnp.int32)
    h1 = jnp.minimum(h0 + 1, H - 1)
    fh = (sh - h0.astype(jnp.float32))[None, None, :, None]
    w0 = jnp.floor(sw).astype(jnp.int32)
    w1 = jnp.minimum(w0 + 1, W - 1)
    fw = (sw - w0.astype(jnp.float32))[None, None, None, :]
    xr = x[:, :, h0, :] * (1.0 - fh) + x[:, :, h1, :] * fh        # (N,C,Ho,W)
    return xr[:, :, :, w0] * (1.0 - fw) + xr[:, :, :, w1] * fw    # (N,C,Ho,Wo)


def _ref_conv_bn_relu(x, w, gamma, beta, mean, var, eps):
    y = jax.lax.conv_general_dilated(
        x, w, window_strides=(1, 1), padding=((1, 1), (1, 1)),
        dimension_numbers=("NCHW", "OIHW", "NCHW"))
    scale = gamma / jnp.sqrt(var + eps)
    y = y * scale[None, :, None, None] + (beta - mean * scale)[None, :, None, None]
    return jnp.maximum(y, 0.0)


def _ref_up_forward(x1, x2, w1, bn1, w2, bn2, eps=1e-5):
    up = _ref_upsample2x_align_corners(x1)
    dy = x2.shape[2] - up.shape[2]
    dx = x2.shape[3] - up.shape[3]
    up = jnp.pad(up, ((0, 0), (0, 0),
                      (dy // 2, dy - dy // 2), (dx // 2, dx - dx // 2)))
    xcat = jnp.concatenate([x2, up], axis=1)
    h = _ref_conv_bn_relu(xcat, w1, *bn1, eps)
    return _ref_conv_bn_relu(h, w2, *bn2, eps)


if __name__ == "__main__":
    key = jax.random.PRNGKey(0)
    ks = jax.random.split(key, 12)

    # Up(in_channels=8, out_channels=4, bilinear=True):
    #   x1: (N, 4, 8, 8) -> upsampled to 16x16; x2: (N, 4, 16, 16)
    #   DoubleConv(8, 4, mid_channels=4)
    # N=4 so the kernel runs with a batch block Nb=2 and still keeps 2 grid steps.
    N = 4
    C1, C2 = 4, 4
    H1, W1 = 8, 8
    H2, W2 = 16, 16
    Cin = C1 + C2
    Cmid = Cin // 2
    Cout = 4
    eps = 1e-5

    x1 = jax.random.normal(ks[0], (N, C1, H1, W1), dtype=jnp.float32)
    x2 = jax.random.normal(ks[1], (N, C2, H2, W2), dtype=jnp.float32)

    w1 = jax.random.normal(ks[2], (Cmid, Cin, 3, 3), dtype=jnp.float32) * 0.1
    bn1 = (1.0 + 0.1 * jax.random.normal(ks[3], (Cmid,), dtype=jnp.float32),   # gamma
           0.1 * jax.random.normal(ks[4], (Cmid,), dtype=jnp.float32),         # beta
           0.1 * jax.random.normal(ks[5], (Cmid,), dtype=jnp.float32),         # running_mean
           jax.random.uniform(ks[6], (Cmid,), jnp.float32, 0.5, 1.5))          # running_var

    w2 = jax.random.normal(ks[7], (Cout, Cmid, 3, 3), dtype=jnp.float32) * 0.1
    bn2 = (1.0 + 0.1 * jax.random.normal(ks[8], (Cout,), dtype=jnp.float32),
           0.1 * jax.random.normal(ks[9], (Cout,), dtype=jnp.float32),
           0.1 * jax.random.normal(ks[10], (Cout,), dtype=jnp.float32),
           jax.random.uniform(ks[11], (Cout,), jnp.float32, 0.5, 1.5))

    y = up_forward(x1, x2, w1, bn1, w2, bn2, eps=eps)
    jax.block_until_ready(y)

    y_ref = _ref_up_forward(x1, x2, w1, bn1, w2, bn2, eps=eps)

    assert y.shape == (N, Cout, H2, W2)
    assert jnp.allclose(y, y_ref, atol=2e-4, rtol=2e-4), \
        float(jnp.max(jnp.abs(y - y_ref)))

    print("KERNEL_OK")
</pallas_src>

<mosaic_0001>
module attributes {stable_mosaic.version = 11 : i64} {
  func.func @_up_kernel(%arg0: i32, %arg1: memref<1x8x64xf32, #tpu.memory_space<vmem>>, %arg2: memref<1x8x256xf32, #tpu.memory_space<vmem>>, %arg3: memref<64x256xf32, #tpu.memory_space<vmem>>, %arg4: memref<9x256xf32, #tpu.memory_space<vmem>>, %arg5: memref<8x144xf32, #tpu.memory_space<vmem>>, %arg6: memref<8x1xf32, #tpu.memory_space<vmem>>, %arg7: memref<8x72xf32, #tpu.memory_space<vmem>>, %arg8: memref<8x1xf32, #tpu.memory_space<vmem>>, %arg9: memref<1x8x256xf32, #tpu.memory_space<vmem>>) attributes {dimension_semantics = [#tpu.dimension_semantics<parallel>], iteration_bounds = array<i64: 2>, scalar_prefetch = 0 : i64, scratch_operands = 0 : i64, tpu.core_type = #tpu.core_type<tc>, window_params = [{transform_indices = @transform_0, window_bounds = array<i64: 1, 8, 64>}, {transform_indices = @transform_1, window_bounds = array<i64: 1, 8, 256>}, {pipeline_mode = #tpu.pipeline_mode<synchronous>, transform_indices = @transform_2, window_bounds = array<i64: 64, 256>}, {pipeline_mode = #tpu.pipeline_mode<synchronous>, transform_indices = @transform_3, window_bounds = array<i64: 9, 256>}, {pipeline_mode = #tpu.pipeline_mode<synchronous>, transform_indices = @transform_4, window_bounds = array<i64: 8, 144>}, {pipeline_mode = #tpu.pipeline_mode<synchronous>, transform_indices = @transform_5, window_bounds = array<i64: 8, 1>}, {pipeline_mode = #tpu.pipeline_mode<synchronous>, transform_indices = @transform_6, window_bounds = array<i64: 8, 72>}, {pipeline_mode = #tpu.pipeline_mode<synchronous>, transform_indices = @transform_7, window_bounds = array<i64: 8, 1>}, {transform_indices = @transform_8, window_bounds = array<i64: 1, 8, 256>}]} {
    %c0 = arith.constant 0 : index
    %c0_0 = arith.constant 0 : index
    %c0_1 = arith.constant 0 : index
    %0 = vector.load %arg1[%c0, %c0_0, %c0_1] : memref<1x8x64xf32, #tpu.memory_space<vmem>>, vector<1x8x64xf32>
    %1 = vector.shape_cast %0 : vector<1x8x64xf32> to vector<8x64xf32>
    %c0_2 = arith.constant 0 : index
    %c0_3 = arith.constant 0 : index
    %c0_4 = arith.constant 0 : index
    %2 = vector.load %arg2[%c0_2, %c0_3, %c0_4] : memref<1x8x256xf32, #tpu.memory_space<vmem>>, vector<1x8x256xf32>
    %3 = vector.shape_cast %2 : vector<1x8x256xf32> to vector<8x256xf32>
    %c0_5 = arith.constant 0 : index
    %c0_6 = arith.constant 0 : index
    %4 = vector.load %arg3[%c0_5, %c0_6] : memref<64x256xf32, #tpu.memory_space<vmem>>, vector<64x256xf32>
    %cst = arith.constant dense<0.000000e+00> : vector<8x256xf32>
    %5 = tpu.matmul %1, %4, %cst {dimension_numbers = #tpu.dot_dimension_numbers<[1], [0], [0], [1], [0, 0, 1, 1], [], []>} : vector<8x64xf32>, vector<64x256xf32>, vector<8x256xf32> -> vector<8x256xf32>
    %6 = tpu.concatenate %3, %5 in 0 : vector<8x256xf32>, vector<8x256xf32> -> vector<16x256xf32>
    %c0_7 = arith.constant 0 : index
    %c0_8 = arith.constant 0 : index
    %7 = vector.load %arg4[%c0_7, %c0_8] : memref<9x256xf32, #tpu.memory_space<vmem>>, vector<9x256xf32>
    %c17_i32 = arith.constant 17 : i32
    %8 = tpu.dynamic_rotate %6 by %c17_i32 dim 1 : vector<16x256xf32>, i32 -> vector<16x256xf32>
    %9 = vector.extract_strided_slice %7 {offsets = [0, 0], sizes = [1, 256], strides = [1, 1]} : vector<9x256xf32> to vector<1x256xf32>
    %10 = vector.broadcast %9 : vector<1x256xf32> to vector<16x256xf32>
    %11 = arith.mulf %8, %10 : vector<16x256xf32>
    %c16_i32 = arith.constant 16 : i32
    %12 = tpu.dynamic_rotate %6 by %c16_i32 dim 1 : vector<16x256xf32>, i32 -> vector<16x256xf32>
    %13 = vector.extract_strided_slice %7 {offsets = [1, 0], sizes = [1, 256], strides = [1, 1]} : vector<9x256xf32> to vector<1x256xf32>
    %14 = vector.broadcast %13 : vector<1x256xf32> to vector<16x256xf32>
    %15 = arith.mulf %12, %14 : vector<16x256xf32>
    %c15_i32 = arith.constant 15 : i32
    %16 = tpu.dynamic_rotate %6 by %c15_i32 dim 1 : vector<16x256xf32>, i32 -> vector<16x256xf32>
    %17 = vector.extract_strided_slice %7 {offsets = [2, 0], sizes = [1, 256], strides = [1, 1]} : vector<9x256xf32> to vector<1x256xf32>
    %18 = vector.broadcast %17 : vector<1x256xf32> to vector<16x256xf32>
    %19 = arith.mulf %16, %18 : vector<16x256xf32>
    %c1_i32 = arith.constant 1 : i32
    %20 = tpu.dynamic_rotate %6 by %c1_i32 dim 1 : vector<16x256xf32>, i32 -> vector<16x256xf32>
    %21 = vector.extract_strided_slice %7 {offsets = [3, 0], sizes = [1, 256], strides = [1, 1]} : vector<9x256xf32> to vector<1x256xf32>
    %22 = vector.broadcast %21 : vector<1x256xf32> to vector<16x256xf32>
    %23 = arith.mulf %20, %22 : vector<16x256xf32>
    %c255_i32 = arith.constant 255 : i32
    %24 = tpu.dynamic_rotate %6 by %c255_i32 dim 1 : vector<16x256xf32>, i32 -> vector<16x256xf32>
    %25 = vector.extract_strided_slice %7 {offsets = [5, 0], sizes = [1, 256], strides = [1, 1]} : vector<9x256xf32> to vector<1x256xf32>
    %26 = vector.broadcast %25 : vector<1x256xf32> to vector<16x256xf32>
    %27 = arith.mulf %24, %26 : vector<16x256xf32>
    %c241_i32 = arith.constant 241 : i32
    %28 = tpu.dynamic_rotate %6 by %c241_i32 dim 1 : vector<16x256xf32>, i32 -> vector<16x256xf32>
    %29 = vector.extract_strided_slice %7 {offsets = [6, 0], sizes = [1, 256], strides = [1, 1]} : vector<9x256xf32> to vector<1x256xf32>
    %30 = vector.broadcast %29 : vector<1x256xf32> to vector<16x256xf32>
    %31 = arith.mulf %28, %30 : vector<16x256xf32>
    %c240_i32 = arith.constant 240 : i32
    %32 = tpu.dynamic_rotate %6 by %c240_i32 dim 1 : vector<16x256xf32>, i32 -> vector<16x256xf32>
    %33 = vector.extract_strided_slice %7 {offsets = [7, 0], sizes = [1, 256], strides = [1, 1]} : vector<9x256xf32> to vector<1x256xf32>
    %34 = vector.broadcast %33 : vector<1x256xf32> to vector<16x256xf32>
    %35 = arith.mulf %32, %34 : vector<16x256xf32>
    %c239_i32 = arith.constant 239 : i32
    %36 = tpu.dynamic_rotate %6 by %c239_i32 dim 1 : vector<16x256xf32>, i32 -> vector<16x256xf32>
    %37 = vector.extract_strided_slice %7 {offsets = [8, 0], sizes = [1, 256], strides = [1, 1]} : vector<9x256xf32> to vector<1x256xf32>
    %38 = vector.broadcast %37 : vector<1x256xf32> to vector<16x256xf32>
    %39 = arith.mulf %36, %38 : vector<16x256xf32>
    %40 = tpu.concatenate %11, %15, %19, %23, %6, %27, %31, %35, %39 in 0 : vector<16x256xf32>, vector<16x256xf32>, vector<16x256xf32>, vector<16x256xf32>, vector<16x256xf32>, vector<16x256xf32>, vector<16x256xf32>, vector<16x256xf32>, vector<16x256xf32> -> vector<144x256xf32>
    %c0_9 = arith.constant 0 : index
    %c0_10 = arith.constant 0 : index
    %41 = vector.load %arg5[%c0_9, %c0_10] : memref<8x144xf32, #tpu.memory_space<vmem>>, vector<8x144xf32>
    %cst_11 = arith.constant dense<0.000000e+00> : vector<8x256xf32>
    %42 = tpu.matmul %41, %40, %cst_11 {dimension_numbers = #tpu.dot_dimension_numbers<[1], [0], [0], [1], [0, 0, 1, 1], [], []>} : vector<8x144xf32>, vector<144x256xf32>, vector<8x256xf32> -> vector<8x256xf32>
    %c0_12 = arith.constant 0 : index
    %c0_13 = arith.constant 0 : index
    %43 = vector.load %arg6[%c0_12, %c0_13] : memref<8x1xf32, #tpu.memory_space<vmem>>, vector<8x1xf32>
    %44 = vector.broadcast %43 : vector<8x1xf32> to vector<8x256xf32>
    %45 = arith.addf %42, %44 : vector<8x256xf32>
    %cst_14 = arith.constant 0.000000e+00 : f32
    %46 = vector.broadcast %cst_14 : f32 to vector<8x256xf32>
    %47 = arith.maximumf %45, %46 : vector<8x256xf32>
    %c17_i32_15 = arith.constant 17 : i32
    %48 = tpu.dynamic_rotate %47 by %c17_i32_15 dim 1 : vector<8x256xf32>, i32 -> vector<8x256xf32>
    %49 = vector.extract_strided_slice %7 {offsets = [0, 0], sizes = [1, 256], strides = [1, 1]} : vector<9x256xf32> to vector<1x256xf32>
    %50 = vector.broadcast %49 : vector<1x256xf32> to vector<8x256xf32>
    %51 = arith.mulf %48, %50 : vector<8x256xf32>
    %c16_i32_16 = arith.constant 16 : i32
    %52 = tpu.dynamic_rotate %47 by %c16_i32_16 dim 1 : vector<8x256xf32>, i32 -> vector<8x256xf32>
    %53 = vector.extract_strided_slice %7 {offsets = [1, 0], sizes = [1, 256], strides = [1, 1]} : vector<9x256xf32> to vector<1x256xf32>
    %54 = vector.broadcast %53 : vector<1x256xf32> to vector<8x256xf32>
    %55 = arith.mulf %52, %54 : vector<8x256xf32>
    %c15_i32_17 = arith.constant 15 : i32
    %56 = tpu.dynamic_rotate %47 by %c15_i32_17 dim 1 : vector<8x256xf32>, i32 -> vector<8x256xf32>
    %57 = vector.extract_strided_slice %7 {offsets = [2, 0], sizes = [1, 256], strides = [1, 1]} : vector<9x256xf32> to vector<1x256xf32>
    %58 = vector.broadcast %57 : vector<1x256xf32> to vector<8x256xf32>
    %59 = arith.mulf %56, %58 : vector<8x256xf32>
    %c1_i32_18 = arith.constant 1 : i32
    %60 = tpu.dynamic_rotate %47 by %c1_i32_18 dim 1 : vector<8x256xf32>, i32 -> vector<8x256xf32>
    %61 = vector.extract_strided_slice %7 {offsets = [3, 0], sizes = [1, 256], strides = [1, 1]} : vector<9x256xf32> to vector<1x256xf32>
    %62 = vector.broadcast %61 : vector<1x256xf32> to vector<8x256xf32>
    %63 = arith.mulf %60, %62 : vector<8x256xf32>
    %c255_i32_19 = arith.constant 255 : i32
    %64 = tpu.dynamic_rotate %47 by %c255_i32_19 dim 1 : vector<8x256xf32>, i32 -> vector<8x256xf32>
    %65 = vector.extract_strided_slice %7 {offsets = [5, 0], sizes = [1, 256], strides = [1, 1]} : vector<9x256xf32> to vector<1x256xf32>
    %66 = vector.broadcast %65 : vector<1x256xf32> to vector<8x256xf32>
    %67 = arith.mulf %64, %66 : vector<8x256xf32>
    %c241_i32_20 = arith.constant 241 : i32
    %68 = tpu.dynamic_rotate %47 by %c241_i32_20 dim 1 : vector<8x256xf32>, i32 -> vector<8x256xf32>
    %69 = vector.extract_strided_slice %7 {offsets = [6, 0], sizes = [1, 256], strides = [1, 1]} : vector<9x256xf32> to vector<1x256xf32>
    %70 = vector.broadcast %69 : vector<1x256xf32> to vector<8x256xf32>
    %71 = arith.mulf %68, %70 : vector<8x256xf32>
    %c240_i32_21 = arith.constant 240 : i32
    %72 = tpu.dynamic_rotate %47 by %c240_i32_21 dim 1 : vector<8x256xf32>, i32 -> vector<8x256xf32>
    %73 = vector.extract_strided_slice %7 {offsets = [7, 0], sizes = [1, 256], strides = [1, 1]} : vector<9x256xf32> to vector<1x256xf32>
    %74 = vector.broadcast %73 : vector<1x256xf32> to vector<8x256xf32>
    %75 = arith.mulf %72, %74 : vector<8x256xf32>
    %c239_i32_22 = arith.constant 239 : i32
    %76 = tpu.dynamic_rotate %47 by %c239_i32_22 dim 1 : vector<8x256xf32>, i32 -> vector<8x256xf32>
    %77 = vector.extract_strided_slice %7 {offsets = [8, 0], sizes = [1, 256], strides = [1, 1]} : vector<9x256xf32> to vector<1x256xf32>
    %78 = vector.broadcast %77 : vector<1x256xf32> to vector<8x256xf32>
    %79 = arith.mulf %76, %78 : vector<8x256xf32>
    %80 = tpu.concatenate %51, %55, %59, %63, %47, %67, %71, %75, %79 in 0 : vector<8x256xf32>, vector<8x256xf32>, vector<8x256xf32>, vector<8x256xf32>, vector<8x256xf32>, vector<8x256xf32>, vector<8x256xf32>, vector<8x256xf32>, vector<8x256xf32> -> vector<72x256xf32>
    %c0_23 = arith.constant 0 : index
    %c0_24 = arith.constant 0 : index
    %81 = vector.load %arg7[%c0_23, %c0_24] : memref<8x72xf32, #tpu.memory_space<vmem>>, vector<8x72xf32>
    %cst_25 = arith.constant dense<0.000000e+00> : vector<8x256xf32>
    %82 = tpu.matmul %81, %80, %cst_25 {dimension_numbers = #tpu.dot_dimension_numbers<[1], [0], [0], [1], [0, 0, 1, 1], [], []>} : vector<8x72xf32>, vector<72x256xf32>, vector<8x256xf32> -> vector<8x256xf32>
    %c0_26 = arith.constant 0 : index
    %c0_27 = arith.constant 0 : index
    %83 = vector.load %arg8[%c0_26, %c0_27] : memref<8x1xf32, #tpu.memory_space<vmem>>, vector<8x1xf32>
    %84 = vector.broadcast %83 : vector<8x1xf32> to vector<8x256xf32>
    %85 = arith.addf %82, %84 : vector<8x256xf32>
    %cst_28 = arith.constant 0.000000e+00 : f32
    %86 = vector.broadcast %cst_28 : f32 to vector<8x256xf32>
    %87 = arith.maximumf %85, %86 : vector<8x256xf32>
    %c0_29 = arith.constant 0 : index
    %c0_30 = arith.constant 0 : index
    %c0_31 = arith.constant 0 : index
    %88 = vector.load %arg9[%c0_29, %c0_30, %c0_31] : memref<1x8x256xf32, #tpu.memory_space<vmem>>, vector<1x8x256xf32>
    %89 = vector.shape_cast %88 : vector<1x8x256xf32> to vector<8x256xf32>
    %90 = vector.shape_cast %87 : vector<8x256xf32> to vector<1x8x256xf32>
    tpu.vector_store %arg9[%c0_29, %c0_30, %c0_31], %90 {strides = array<i32>} : memref<1x8x256xf32, #tpu.memory_space<vmem>>, vector<1x8x256xf32>,
    return
  }
  func.func @transform_0(%arg0: i32) -> (i32, i32, i32) {
    %c0_i32 = arith.constant 0 : i32
    %c0_i32_0 = arith.constant 0 : i32
    %c0_i32_1 = arith.constant 0 : i32
    return %arg0, %c0_i32, %c0_i32_0 : i32, i32, i32
  }
  func.func @transform_1(%arg0: i32) -> (i32, i32, i32) {
    %c0_i32 = arith.constant 0 : i32
    %c0_i32_0 = arith.constant 0 : i32
    %c0_i32_1 = arith.constant 0 : i32
    return %arg0, %c0_i32, %c0_i32_0 : i32, i32, i32
  }
  func.func @transform_2(%arg0: i32) -> (i32, i32) {
    %c0_i32 = arith.constant 0 : i32
    %c0_i32_0 = arith.constant 0 : i32
    %c0_i32_1 = arith.constant 0 : i32
    return %c0_i32, %c0_i32_0 : i32, i32
  }
  func.func @transform_3(%arg0: i32) -> (i32, i32) {
    %c0_i32 = arith.constant 0 : i32
    %c0_i32_0 = arith.constant 0 : i32
    %c0_i32_1 = arith.constant 0 : i32
    return %c0_i32, %c0_i32_0 : i32, i32
  }
  func.func @transform_4(%arg0: i32) -> (i32, i32) {
    %c0_i32 = arith.constant 0 : i32
    %c0_i32_0 = arith.constant 0 : i32
    %c0_i32_1 = arith.constant 0 : i32
    return %c0_i32, %c0_i32_0 : i32, i32
  }
  func.func @transform_5(%arg0: i32) -> (i32, i32) {
    %c0_i32 = arith.constant 0 : i32
    %c0_i32_0 = arith.constant 0 : i32
    %c0_i32_1 = arith.constant 0 : i32
    return %c0_i32, %c0_i32_0 : i32, i32
  }
  func.func @transform_6(%arg0: i32) -> (i32, i32) {
    %c0_i32 = arith.constant 0 : i32
    %c0_i32_0 = arith.constant 0 : i32
    %c0_i32_1 = arith.constant 0 : i32
    return %c0_i32, %c0_i32_0 : i32, i32
  }
  func.func @transform_7(%arg0: i32) -> (i32, i32) {
    %c0_i32 = arith.constant 0 : i32
    %c0_i32_0 = arith.constant 0 : i32
    %c0_i32_1 = arith.constant 0 : i32
    return %c0_i32, %c0_i32_0 : i32, i32
  }
  func.func @transform_8(%arg0: i32) -> (i32, i32, i32) {
    %c0_i32 = arith.constant 0 : i32
    %c0_i32_0 = arith.constant 0 : i32
    %c0_i32_1 = arith.constant 0 : i32
    return %arg0, %c0_i32, %c0_i32_0 : i32, i32, i32
  }
}

</mosaic_0001>

<llo_original>
// kernel: tpu_custom_call.1
$region0: #{tpu_custom_call.1}
  #allocation0 [shape = 'u32[]', space=smem, size = 0x4, offset = 0x4, fixed_abs, tag = 'smem constant byte address 0x4 - core index']
  #allocation1 [shape = 'u32[144,128]{1,0:T(1,128)}', space=vmem, size = 0x12000, scoped, tag = 'internal scratch']
  %s0 = inlined_call_operand.vmem [shape: f32[2,8,64], index: 0, kind: input, shape index: {}]
  %s1 = inlined_call_operand.hbm [shape: f32[2,8,256], index: 1, kind: input, shape index: {}]
  %s2 = inlined_call_operand.hbm [shape: f32[64,256], index: 2, kind: input, shape index: {}]
  %s3 = inlined_call_operand.hbm [shape: f32[9,256], index: 3, kind: input, shape index: {}]
  %s4 = inlined_call_operand.hbm [shape: f32[8,144], index: 4, kind: input, shape index: {}]
  %s5 = inlined_call_operand.vmem [shape: f32[8,1], index: 5, kind: input, shape index: {}]
  %s6 = inlined_call_operand.vmem [shape: f32[8,72], index: 6, kind: input, shape index: {}]
  %s7 = inlined_call_operand.vmem [shape: f32[8,1], index: 7, kind: input, shape index: {}]
  %s8 = inlined_call_operand.hbm [shape: f32[2,8,256], index: 8, kind: output, shape index: {}]
  %s9 = sld [smem:[#allocation0]]
  $region81: #{tpu_custom_call.1} parent=0
    _
  %s11 = ssub.s32 1, %s9
  %s12 = scalar_select 0, %s11, %s9
  $region1: #{tpu_custom_call.1} parent=0
    #allocation2 [shape = 'u8[16384]{0}', space=vmem, size = 0x4000, scoped, tag = 'input window, operand 1']
    #allocation3 [shape = 's32[2]{0}', space=sflag, size = 0x8, scoped, tag = 'scoped memory for tpu_custom_call.1']
    #allocation4 [shape = 's32[2]{0}', space=sflag, size = 0x8, scoped, tag = 'scoped memory for tpu_custom_call.1']
    #allocation5 [shape = 'u8[65536]{0}', space=vmem, size = 0x10000, scoped, tag = 'input window, operand 2, single buffered']
    #allocation6 [shape = 's32[1]{0}', space=sflag, size = 0x4, scoped, tag = 'scoped memory for tpu_custom_call.1']
    #allocation7 [shape = 'u8[16384]{0}', space=vmem, size = 0x4000, scoped, tag = 'input window, operand 3, single buffered']
    #allocation8 [shape = 'u8[8192]{0}', space=vmem, size = 0x2000, scoped, tag = 'input window, operand 4, single buffered']
    #allocation9 [shape = 's32[1]{0}', space=sflag, size = 0x4, scoped, tag = 'scoped memory for tpu_custom_call.1']
    #allocation10 [shape = 'u8[16384]{0}', space=vmem, size = 0x4000, scoped, tag = 'output window, operand 0']
    %13 = vsyncpa [#allocation3], 0
    %s14 = scalar_lea.sflag [#allocation3], 1
    %15 = vsyncpa %s14, 0
    %16 = vsyncpa [#allocation6], 0
    %17 = vsyncpa [#allocation9], 0
    %18 = vsyncpa [#allocation4], 0
    %s19 = scalar_lea.sflag [#allocation4], 1
    %20 = vsyncpa %s19, 0
    loop: start=0, step=1, limit=4
    $region2: #{tpu_custom_call.1} parent=1 // loop_pre_header
      _
    $region3: #{tpu_custom_call.1} parent=1 // loop_header
      %s22 = sphi 0, %s26
      %p23 = scmp.ge.s32.totalorder %s22, 4
      %s32 = sphi 0, %s34
      %s35 = sphi 0, %s32
      %s36 = sphi 0, %s35
      %s52 = sphi 0, %s36
      %s58 = sphi 0, %s60
      %s61 = sphi 0, %s58
      %s62 = sphi 0, %s61
      %s78 = sphi 0, %s62
      %s82 = sphi 0, %s82
      %s84 = sphi 0, %s82
      %s85 = sphi 0, %s84
      %s99 = sphi 0, %s85
      %s103 = sphi 0, %s103
      %s105 = sphi 0, %s103
      %s106 = sphi 0, %s105
      %s120 = sphi 0, %s106
      %s124 = sphi 0, %s124
      %s126 = sphi 0, %s124
      %s127 = sphi 0, %s126
      %s141 = sphi 0, %s127
      %s145 = sphi 0, %s145
      %s147 = sphi 0, %s145
      %s148 = sphi 0, %s147
      %s162 = sphi 0, %s148
      %s166 = sphi 0, %s166
      %s168 = sphi 0, %s166
      %s169 = sphi 0, %s168
      %s183 = sphi 0, %s169
      %s187 = sphi 0, %s187
      %s189 = sphi 0, %s187
      %s190 = sphi 0, %s189
      %s204 = sphi 0, %s190
      %s210 = sphi 0, %s212
      %s213 = sphi 0, %s210
      %s214 = sphi 0, %s213
      %s230 = sphi 0, %s214
    $region4: #{tpu_custom_call.1} parent=1 // loop_header_branch
      %25 = sbr.rel (%p23) target = $region8
    $region5: #{tpu_custom_call.1} parent=1 // loop_body
      %s27 = ssub.s32 %s22, 1
      %s28 = ssub.s32 %s22, 2
      %s29 = sadd.s32 %s22, 1
      %s30 = ssub.s32 %s22, %s29
      %p31 = scmp.eq.s32.totalorder %s30, 0
      %s33 = sadd.s32 %s32, 1
      %s34 = scalar_select %p31, %s32, %s33
      %p37 = pneg %p31
      %p38 = scmp.eq.s32.totalorder %s22, 1
      %p39 = por %p37, %p38
      %p40 = scmp.ne.s32.totalorder %s32, %s35
      %p41 = scmp.eq.s32.totalorder %s22, 0
      %p42 = por %p40, %p41
      %p43 = scmp.ne.s32.totalorder %s32, %s35
      %p44 = scmp.eq.s32.totalorder %s27, 1
      %p45 = por %p43, %p44
      %p46 = scmp.ne.s32.totalorder %s35, %s36
      %p47 = scmp.eq.s32.totalorder %s27, 0
      %p48 = por %p46, %p47
      %p49 = scmp.ne.s32.totalorder %s35, %s36
      %p50 = scmp.eq.s32.totalorder %s28, 1
      %p51 = por %p49, %p50
      %p53 = scmp.ne.s32.totalorder %s36, %s52
      %p54 = scmp.eq.s32.totalorder %s28, 0
      %p55 = por %p53, %p54
      %s56 = ssub.s32 %s22, %s29
      %p57 = scmp.eq.s32.totalorder %s56, 0
      %s59 = sadd.s32 %s58, 1
      %s60 = scalar_select %p57, %s58, %s59
      %p63 = pneg %p57
      %p64 = scmp.eq.s32.totalorder %s22, 1
      %p65 = por %p63, %p64
      %p66 = scmp.ne.s32.totalorder %s58, %s61
      %p67 = scmp.eq.s32.totalorder %s22, 0
      %p68 = por %p66, %p67
      %p69 = scmp.ne.s32.totalorder %s58, %s61
      %p70 = scmp.eq.s32.totalorder %s27, 1
      %p71 = por %p69, %p70
      %p72 = scmp.ne.s32.totalorder %s61, %s62
      %p73 = scmp.eq.s32.totalorder %s27, 0
      %p74 = por %p72, %p73
      %p75 = scmp.ne.s32.totalorder %s61, %s62
      %p76 = scmp.eq.s32.totalorder %s28, 1
      %p77 = por %p75, %p76
      %p79 = scmp.ne.s32.totalorder %s62, %s78
      %p80 = scmp.eq.s32.totalorder %s28, 0
      %p81 = por %p79, %p80
      %s83 = sadd.s32 %s82, 1
      %p86 = scmp.eq.s32.totalorder %s22, 1
      %p87 = scmp.ne.s32.totalorder %s82, %s84
      %p88 = scmp.eq.s32.totalorder %s22, 0
      %p89 = por %p87, %p88
      %p90 = scmp.ne.s32.totalorder %s82, %s84
      %p91 = scmp.eq.s32.totalorder %s27, 1
      %p92 = por %p90, %p91
      %p93 = scmp.ne.s32.totalorder %s84, %s85
      %p94 = scmp.eq.s32.totalorder %s27, 0
      %p95 = por %p93, %p94
      %p96 = scmp.ne.s32.totalorder %s84, %s85
      %p97 = scmp.eq.s32.totalorder %s28, 1
      %p98 = por %p96, %p97
      %p100 = scmp.ne.s32.totalorder %s85, %s99
      %p101 = scmp.eq.s32.totalorder %s28, 0
      %p102 = por %p100, %p101
      %s104 = sadd.s32 %s103, 1
      %p107 = scmp.eq.s32.totalorder %s22, 1
      %p108 = scmp.ne.s32.totalorder %s103, %s105
      %p109 = scmp.eq.s32.totalorder %s22, 0
      %p110 = por %p108, %p109
      %p111 = scmp.ne.s32.totalorder %s103, %s105
      %p112 = scmp.eq.s32.totalorder %s27, 1
      %p113 = por %p111, %p112
      %p114 = scmp.ne.s32.totalorder %s105, %s106
      %p115 = scmp.eq.s32.totalorder %s27, 0
      %p116 = por %p114, %p115
      %p117 = scmp.ne.s32.totalorder %s105, %s106
      %p118 = scmp.eq.s32.totalorder %s28, 1
      %p119 = por %p117, %p118
      %p121 = scmp.ne.s32.totalorder %s106, %s120
      %p122 = scmp.eq.s32.totalorder %s28, 0
      %p123 = por %p121, %p122
      %s125 = sadd.s32 %s124, 1
      %p128 = scmp.eq.s32.totalorder %s22, 1
      %p129 = scmp.ne.s32.totalorder %s124, %s126
      %p130 = scmp.eq.s32.totalorder %s22, 0
      %p131 = por %p129, %p130
      %p132 = scmp.ne.s32.totalorder %s124, %s126
      %p133 = scmp.eq.s32.totalorder %s27, 1
      %p134 = por %p132, %p133
      %p135 = scmp.ne.s32.totalorder %s126, %s127
      %p136 = scmp.eq.s32.totalorder %s27, 0
      %p137 = por %p135, %p136
      %p138 = scmp.ne.s32.totalorder %s126, %s127
      %p139 = scmp.eq.s32.totalorder %s28, 1
      %p140 = por %p138, %p139
      %p142 = scmp.ne.s32.totalorder %s127, %s141
      %p143 = scmp.eq.s32.totalorder %s28, 0
      %p144 = por %p142, %p143
      %s146 = sadd.s32 %s145, 1
      %p149 = scmp.eq.s32.totalorder %s22, 1
      %p150 = scmp.ne.s32.totalorder %s145, %s147
      %p151 = scmp.eq.s32.totalorder %s22, 0
      %p152 = por %p150, %p151
      %p153 = scmp.ne.s32.totalorder %s145, %s147
      %p154 = scmp.eq.s32.totalorder %s27, 1
      %p155 = por %p153, %p154
      %p156 = scmp.ne.s32.totalorder %s147, %s148
      %p157 = scmp.eq.s32.totalorder %s27, 0
      %p158 = por %p156, %p157
      %p159 = scmp.ne.s32.totalorder %s147, %s148
      %p160 = scmp.eq.s32.totalorder %s28, 1
      %p161 = por %p159, %p160
      %p163 = scmp.ne.s32.totalorder %s148, %s162
      %p164 = scmp.eq.s32.totalorder %s28, 0
      %p165 = por %p163, %p164
      %s167 = sadd.s32 %s166, 1
      %p170 = scmp.eq.s32.totalorder %s22, 1
      %p171 = scmp.ne.s32.totalorder %s166, %s168
      %p172 = scmp.eq.s32.totalorder %s22, 0
      %p173 = por %p171, %p172
      %p174 = scmp.ne.s32.totalorder %s166, %s168
      %p175 = scmp.eq.s32.totalorder %s27, 1
      %p176 = por %p174, %p175
      %p177 = scmp.ne.s32.totalorder %s168, %s169
      %p178 = scmp.eq.s32.totalorder %s27, 0
      %p179 = por %p177, %p178
      %p180 = scmp.ne.s32.totalorder %s168, %s169
      %p181 = scmp.eq.s32.totalorder %s28, 1
      %p182 = por %p180, %p181
      %p184 = scmp.ne.s32.totalorder %s169, %s183
      %p185 = scmp.eq.s32.totalorder %s28, 0
      %p186 = por %p184, %p185
      %s188 = sadd.s32 %s187, 1
      %p191 = scmp.eq.s32.totalorder %s22, 1
      %p192 = scmp.ne.s32.totalorder %s187, %s189
      %p193 = scmp.eq.s32.totalorder %s22, 0
      %p194 = por %p192, %p193
      %p195 = scmp.ne.s32.totalorder %s187, %s189
      %p196 = scmp.eq.s32.totalorder %s27, 1
      %p197 = por %p195, %p196
      %p198 = scmp.ne.s32.totalorder %s189, %s190
      %p199 = scmp.eq.s32.totalorder %s27, 0
      %p200 = por %p198, %p199
      %p201 = scmp.ne.s32.totalorder %s189, %s190
      %p202 = scmp.eq.s32.totalorder %s28, 1
      %p203 = por %p201, %p202
      %p205 = scmp.ne.s32.totalorder %s190, %s204
      %p206 = scmp.eq.s32.totalorder %s28, 0
      %p207 = por %p205, %p206
      %s208 = ssub.s32 %s22, %s29
      %p209 = scmp.eq.s32.totalorder %s208, 0
      %s211 = sadd.s32 %s210, 1
      %s212 = scalar_select %p209, %s210, %s211
      %p215 = pneg %p209
      %p216 = scmp.eq.s32.totalorder %s22, 1
      %p217 = por %p215, %p216
      %p218 = scmp.ne.s32.totalorder %s210, %s213
      %p219 = scmp.eq.s32.totalorder %s22, 0
      %p220 = por %p218, %p219
      %p221 = scmp.ne.s32.totalorder %s210, %s213
      %p222 = scmp.eq.s32.totalorder %s27, 1
      %p223 = por %p221, %p222
      %p224 = scmp.ne.s32.totalorder %s213, %s214
      %p225 = scmp.eq.s32.totalorder %s27, 0
      %p226 = por %p224, %p225
      %p227 = scmp.ne.s32.totalorder %s213, %s214
      %p228 = scmp.eq.s32.totalorder %s28, 1
      %p229 = por %p227, %p228
      %p231 = scmp.ne.s32.totalorder %s214, %s230
      %p232 = scmp.eq.s32.totalorder %s28, 0
      %p233 = por %p231, %p232
      %p234 = scmp.le.s32.totalorder 1, %s22
      %p235 = scmp.lt.s32.totalorder %s22, 3
      %p236 = pnand %p234, %p235
      %p237 = pneg %p236
      // Predicated region
      $region9: #{tpu_custom_call.1} parent=5 // pred_check
        _
      $region10: #{tpu_custom_call.1} parent=5 // pred_check_branch
        %239 = sbr.rel (%p236) target = $region12
      $region11: #{tpu_custom_call.1} parent=5 // pred_region
        %s240 = ssub.s32 %s22, 1
        // Predicated region
        $region13: #{tpu_custom_call.1} parent=11 // pred_check
          %p241 = pneg %p95
        $region14: #{tpu_custom_call.1} parent=11 // pred_check_branch
          %243 = sbr.rel (%p241) target = $region16
        $region15: #{tpu_custom_call.1} parent=11 // pred_region
          %s245 = ssub.s32 2048, 2048
          %246 = vsyncadd [#allocation6], %s245
          %s247 = sshll.u32 [#allocation5], 4
          %s248 = int_to_ptr.vmem [resolvable:$true] %s247
          %253 = dma.hbm_to_vmem [thread:$0]  %s2, 2048, %s248, [#allocation6], 256, 256, 16
        $region16: #{tpu_custom_call.1} parent=11 // pred_fallthru
          _
        // Predicated region
        $region17: #{tpu_custom_call.1} parent=11 // pred_check
          %p254 = pneg %p116
        $region18: #{tpu_custom_call.1} parent=11 // pred_check_branch
          %256 = sbr.rel (%p254) target = $region20
        $region19: #{tpu_custom_call.1} parent=11 // pred_region
          %s258 = ssub.s32 512, 512
          %259 = vsyncadd [#allocation6], %s258
          %s260 = sshll.u32 [#allocation7], 4
          %s261 = int_to_ptr.vmem [resolvable:$true] %s260
          %266 = dma.hbm_to_vmem [thread:$0]  %s3, 512, %s261, [#allocation6], 256, 256, 16
        $region20: #{tpu_custom_call.1} parent=11 // pred_fallthru
          _
        // Predicated region
        $region21: #{tpu_custom_call.1} parent=11 // pred_check
          %p267 = pneg %p137
        $region22: #{tpu_custom_call.1} parent=11 // pred_check_branch
          %269 = sbr.rel (%p267) target = $region24
        $region23: #{tpu_custom_call.1} parent=11 // pred_region
          %s271 = ssub.s32 256, 256
          %272 = vsyncadd [#allocation9], %s271
          %s274 = sshll.u32 [#allocation8], 4
          %s275 = int_to_ptr.vmem [resolvable:$true] %s274
          %277 = dma.hbm_to_vmem [thread:$0]  %s4, 256, %s275, [#allocation9]
        $region24: #{tpu_custom_call.1} parent=11 // pred_fallthru
          _
        // Predicated region
        $region25: #{tpu_custom_call.1} parent=11 // pred_check
          %p278 = pneg %p158
        $region26: #{tpu_custom_call.1} parent=11 // pred_check_branch
          %280 = sbr.rel (%p278) target = $region28
        $region27: #{tpu_custom_call.1} parent=11 // pred_region
          _
        $region28: #{tpu_custom_call.1} parent=11 // pred_fallthru
          _
        // Predicated region
        $region29: #{tpu_custom_call.1} parent=11 // pred_check
          %p281 = pneg %p179
        $region30: #{tpu_custom_call.1} parent=11 // pred_check_branch
          %283 = sbr.rel (%p281) target = $region32
        $region31: #{tpu_custom_call.1} parent=11 // pred_region
          _
        $region32: #{tpu_custom_call.1} parent=11 // pred_fallthru
          _
        // Predicated region
        $region33: #{tpu_custom_call.1} parent=11 // pred_check
          %p284 = pneg %p200
        $region34: #{tpu_custom_call.1} parent=11 // pred_check_branch
          %286 = sbr.rel (%p284) target = $region36
        $region35: #{tpu_custom_call.1} parent=11 // pred_region
          _
        $region36: #{tpu_custom_call.1} parent=11 // pred_fallthru
          _
      $region12: #{tpu_custom_call.1} parent=5 // pred_fallthru
        _
      %p287 = scmp.lt.s32.totalorder %s22, 2
      // Predicated region
      $region37: #{tpu_custom_call.1} parent=5 // pred_check
        %p288 = pneg %p287
      $region38: #{tpu_custom_call.1} parent=5 // pred_check_branch
        %290 = sbr.rel (%p288) target = $region40
      $region39: #{tpu_custom_call.1} parent=5 // pred_region
        // Predicated region
        $region41: #{tpu_custom_call.1} parent=39 // pred_check
          %p291 = pneg %p42
        $region42: #{tpu_custom_call.1} parent=39 // pred_check_branch
          %293 = sbr.rel (%p291) target = $region44
        $region43: #{tpu_custom_call.1} parent=39 // pred_region
          %p294 = scmp.lt.s32.totalorder %s22, 1
          %s295 = scalar_select %p294, %s22, 1
          %s296 = smul.addr %s295, 8
          %s297 = scalar_lea.vmem %s0, %s296
        $region44: #{tpu_custom_call.1} parent=39 // pred_fallthru
          _
        // Predicated region
        $region45: #{tpu_custom_call.1} parent=39 // pred_check
          %p298 = pneg %p68
        $region46: #{tpu_custom_call.1} parent=39 // pred_check_branch
          %300 = sbr.rel (%p298) target = $region48
        $region47: #{tpu_custom_call.1} parent=39 // pred_region
          %s301 = sand.u32 %s58, 1
          %s302 = scalar_lea.sflag [#allocation3], %s301
          %s303 = sand.u32 %s58, 1
          %s304 = smul.addr %s303, 16
          %s305 = scalar_lea.vmem [#allocation2], %s304
          %s307 = ssub.s32 256, 256
          %308 = vsyncadd %s302, %s307
          %s309 = smul.addr %s22, 2
          %s310 = smul.addr %s309, 128
          %s311 = scalar_lea.hbm %s1, %s310
          %s313 = sshll.u32 %s305, 4
          %s314 = int_to_ptr.vmem [resolvable:$true] %s313
          %316 = dma.hbm_to_vmem [thread:$0]  %s311, 256, %s314, %s302
        $region48: #{tpu_custom_call.1} parent=39 // pred_fallthru
          _
      $region40: #{tpu_custom_call.1} parent=5 // pred_fallthru
        _
      %p317 = scmp.le.s32.totalorder 1, %s22
      %p318 = scmp.lt.s32.totalorder %s22, 3
      %p319 = pnand %p317, %p318
      %p320 = pneg %p319
      // Predicated region
      $region49: #{tpu_custom_call.1} parent=5 // pred_check
        _
      $region50: #{tpu_custom_call.1} parent=5 // pred_check_branch
        %322 = sbr.rel (%p319) target = $region52
      $region51: #{tpu_custom_call.1} parent=5 // pred_region
        %s323 = ssub.s32 %s22, 1
        %s324 = sand.u32 %s61, 1
        %s325 = scalar_lea.sflag [#allocation3], %s324
        %s326 = sand.u32 %s61, 1
        %s327 = smul.addr %s326, 16
        %s328 = scalar_lea.vmem [#allocation2], %s327
        // Predicated region
        $region53: #{tpu_custom_call.1} parent=51 // pred_check
          %p329 = pneg %p74
        $region54: #{tpu_custom_call.1} parent=51 // pred_check_branch
          %331 = sbr.rel (%p329) target = $region56
        $region55: #{tpu_custom_call.1} parent=51 // pred_region
          %332 = dma.done %s325, 256
        $region56: #{tpu_custom_call.1} parent=51 // pred_fallthru
          _
        // Predicated region
        $region57: #{tpu_custom_call.1} parent=51 // pred_check
          %p333 = pneg %p95
        $region58: #{tpu_custom_call.1} parent=51 // pred_check_branch
          %335 = sbr.rel (%p333) target = $region60
        $region59: #{tpu_custom_call.1} parent=51 // pred_region
          %336 = dma.done [#allocation6], 2048
        $region60: #{tpu_custom_call.1} parent=51 // pred_fallthru
          _
        // Predicated region
        $region61: #{tpu_custom_call.1} parent=51 // pred_check
          %p337 = pneg %p116
        $region62: #{tpu_custom_call.1} parent=51 // pred_check_branch
          %339 = sbr.rel (%p337) target = $region64
        $region63: #{tpu_custom_call.1} parent=51 // pred_region
          %340 = dma.done [#allocation6], 512
        $region64: #{tpu_custom_call.1} parent=51 // pred_fallthru
          _
        // Predicated region
        $region65: #{tpu_custom_call.1} parent=51 // pred_check
          %p341 = pneg %p137
        $region66: #{tpu_custom_call.1} parent=51 // pred_check_branch
          %343 = sbr.rel (%p341) target = $region68
        $region67: #{tpu_custom_call.1} parent=51 // pred_region
          %344 = dma.done [#allocation9], 256
        $region68: #{tpu_custom_call.1} parent=51 // pred_fallthru
          _
        %p345 = scmp.lt.s32.totalorder %s27, 1
        %s346 = scalar_select %p345, %s27, 1
        %s347 = smul.addr %s346, 8
        %s348 = scalar_lea.vmem %s0, %s347
        %p349 = pneg %p48
        %p350 = pneg %p45
        %s351 = sand.u32 %s61, 1
        %s352 = scalar_lea.sflag [#allocation3], %s351
        %s353 = sand.u32 %s61, 1
        %s354 = smul.addr %s353, 16
        %s355 = scalar_lea.vmem [#allocation2], %s354
        %p356 = pneg %p74
        %p357 = pneg %p71
        %p358 = pneg %p95
        %p359 = pneg %p92
        %p360 = pneg %p116
        %p361 = pneg %p113
        %p362 = pneg %p137
        %p363 = pneg %p134
        %p364 = pneg %p158
        %p365 = pneg %p155
        %p366 = pneg %p179
        %p367 = pneg %p176
        %p368 = pneg %p200
        %p369 = pneg %p197
        %p370 = pneg %p226
        %p371 = pneg %p223
        %s372 = sand.u32 %s213, 1
        %s373 = scalar_lea.sflag [#allocation4], %s372
        %s374 = sand.u32 %s213, 1
        %s375 = smul.addr %s374, 16
        %s376 = scalar_lea.vmem [#allocation10], %s375
        %p377 = scmp.lt.s32.totalorder %s27, 1
        %s378 = scalar_select %p377, %s27, 1
        %s379 = smul.addr %s378, 8
        %s380 = scalar_lea.vmem %s0, %s379
        %v381 = vld [vmem:[%s380] sm:$0xff]
        %v382 = vld [vmem:[%s328] sm:$0xff]
        %v383 = vld [vmem:[%s328 + $0x8] sm:$0xff]
        %v384 = vld [vmem:[#allocation5] sm:$0xff]
        %v385 = vld [vmem:[#allocation5 + $0x8] sm:$0xff]
        %v386 = vld [vmem:[#allocation5 + $0x10] sm:$0xff]
        %v387 = vld [vmem:[#allocation5 + $0x18] sm:$0xff]
        %v388 = vld [vmem:[#allocation5 + $0x20] sm:$0xff]
        %v389 = vld [vmem:[#allocation5 + $0x28] sm:$0xff]
        %v390 = vld [vmem:[#allocation5 + $0x30] sm:$0xff]
        %v391 = vld [vmem:[#allocation5 + $0x38] sm:$0xff]
        %v392 = vld [vmem:[#allocation5 + $0x40] sm:$0xff]
        %v393 = vld [vmem:[#allocation5 + $0x48] sm:$0xff]
        %v394 = vld [vmem:[#allocation5 + $0x50] sm:$0xff]
        %v395 = vld [vmem:[#allocation5 + $0x58] sm:$0xff]
        %v396 = vld [vmem:[#allocation5 + $0x60] sm:$0xff]
        %v397 = vld [vmem:[#allocation5 + $0x68] sm:$0xff]
        %v398 = vld [vmem:[#allocation5 + $0x70] sm:$0xff]
        %v399 = vld [vmem:[#allocation5 + $0x78] sm:$0xff]
        %vm400 = vcmask 523264
        %v402 = vsel %vm400, %v381, 0
        %404 = vmatprep.subr.mxu0 0.0
        %405 = vmatpush1.msra.mxu0 0.0
        %406 = vmatprep.subr.mxu0 0.0
        %407 = vmatpush1.msra.mxu0 0.0
        %408 = vmatprep.subr.mxu0 0.0
        %409 = vmatpush1.msra.mxu0 0.0
        %410 = vmatprep.subr.mxu0 0.0
        %411 = vmatpush1.msra.mxu0 0.0
        %412 = vmatprep.subr.mxu0 0.0
        %413 = vmatpush1.msra.mxu0 0.0
        %414 = vmatprep.subr.mxu0 0.0
        %415 = vmatpush1.msra.mxu0 0.0
        %416 = vmatprep.subr.mxu0 0.0
        %417 = vmatpush1.msra.mxu0 0.0
        %418 = vmatprep.subr.mxu0 0.0
        %419 = vmatpush1.msra.mxu0 0.0
        %420 = vmatprep.subr.mxu0 %v399
        %421 = vmatpush1.msra.mxu0 %v398
        %422 = vmatprep.subr.mxu0 %v397
        %423 = vmatpush1.msra.mxu0 %v396
        %424 = vmatprep.subr.mxu0 %v395
        %425 = vmatpush1.msra.mxu0 %v394
        %426 = vmatprep.subr.mxu0 %v393
        %427 = vmatpush1.msra.mxu0 %v392
        %428 = vmatprep.subr.mxu0 %v391
        %429 = vmatpush1.msra.mxu0 %v390
        %430 = vmatprep.subr.mxu0 %v389
        %431 = vmatpush1.msra.mxu0 %v388
        %432 = vmatprep.subr.mxu0 %v387
        %433 = vmatpush1.msra.mxu0 %v386
        %434 = vmatprep.subr.mxu0 %v385
        %435 = vmatpush1.msra.mxu0 %v384
        %436 = vmatprep.subr.mxu0 0.0
        %437 = vmatpush2.msra.mxu0 0.0
        %438 = vmatprep.subr.mxu0 0.0
        %439 = vmatpush2.msra.mxu0 0.0
        %440 = vmatprep.subr.mxu0 0.0
        %441 = vmatpush2.msra.mxu0 0.0
        %442 = vmatprep.subr.mxu0 0.0
        %443 = vmatpush2.msra.mxu0 0.0
        %444 = vmatprep.subr.mxu0 0.0
        %445 = vmatpush2.msra.mxu0 0.0
        %446 = vmatprep.subr.mxu0 0.0
        %447 = vmatpush2.msra.mxu0 0.0
        %448 = vmatprep.subr.mxu0 0.0
        %449 = vmatpush2.msra.mxu0 0.0
        %450 = vmatprep.subr.mxu0 0.0
        %451 = vmatpush2.msra.mxu0 0.0
        %452 = vmatprep.subr.mxu0 0.0
        %453 = vmatpush2.msra.mxu0 0.0
        %454 = vmatprep.subr.mxu0 0.0
        %455 = vmatpush2.msra.mxu0 0.0
        %456 = vmatprep.subr.mxu0 0.0
        %457 = vmatpush2.msra.mxu0 0.0
        %458 = vmatprep.subr.mxu0 0.0
        %459 = vmatpush2.msra.mxu0 0.0
        %460 = vmatprep.subr.mxu0 0.0
        %461 = vmatpush2.msra.mxu0 0.0
        %462 = vmatprep.subr.mxu0 0.0
        %463 = vmatpush2.msra.mxu0 0.0
        %464 = vmatprep.subr.mxu0 0.0
        %465 = vmatpush2.msra.mxu0 0.0
        %466 = vmatprep.subr.mxu0 0.0
        %467 = vmatpush2.msra.mxu0 0.0
        %468 = vmatprep.mubr.f32.mxu0 0.0
        %469 = vmatmul.mubr.f32.gmra.mxu0 %v402
        %v470 = vpop.f32.mrf.mxu0
        %v471 = vadd.f32 0.0, %v470
        %v472 = vpop.f32.mrf.mxu0
        %v473 = vadd.f32 0.0, %v472
        %474 = vdwg.mxu0
        %v475 = vld [vmem:[#allocation7] sm:$0xff]
        %v476 = vld [vmem:[#allocation7 + $0x8] sm:$0xff]
        %v477 = vld [vmem:[#allocation7 + $0x10] sm:$0x1]
        %v478 = vld [vmem:[#allocation7 + $0x18] sm:$0x1]
        %479 = vrot.lane.b32.xlu0 %v382, 17
        %v480 = vpop.permute.xlu0 %479
        %481 = vrot.lane.b32.xlu0 %v471, 17
        %v482 = vpop.permute.xlu0 %481
        %483 = vrot.lane.b32.xlu0 %v383, 17
        %v484 = vpop.permute.xlu0 %483
        %485 = vrot.lane.b32.xlu0 %v473, 17
        %v486 = vpop.permute.xlu0 %485
        %v487 = vlaneseq
        %v488 = vand.u32 %v487, 127
        %vm489 = vcmp.lt.s32.totalorder %v488, 17
        %v490 = vsel %vm489, %v480, %v484
        %v491 = vsel %vm489, %v482, %v486
        %v492 = vsel %vm489, %v484, %v480
        %v493 = vsel %vm489, %v486, %v482
        %v494 = vlaneseq
        %v495 = vshrl.u32 %v494, 7
        %v496 = vsub.s32 0, %v495
        %v497 = vrot.slane %v475, %v496
        %v498 = vlaneseq
        %v499 = vshrl.u32 %v498, 7
        %v500 = vsub.s32 0, %v499
        %v501 = vrot.slane %v476, %v500
        %v502 = vmul.f32 %v492, %v497
        %v503 = vmul.f32 %v490, %v501
        %v504 = vmul.f32 %v493, %v497
        %v505 = vmul.f32 %v491, %v501
        %506 = vrot.lane.b32.xlu0 %v382, 16
        %v507 = vpop.permute.xlu0 %506
        %508 = vrot.lane.b32.xlu0 %v471, 16
        %v509 = vpop.permute.xlu0 %508
        %510 = vrot.lane.b32.xlu0 %v383, 16
        %v511 = vpop.permute.xlu0 %510
        %512 = vrot.lane.b32.xlu0 %v473, 16
        %v513 = vpop.permute.xlu0 %512
        %vm514 = vcmp.lt.s32.totalorder %v488, 16
        %v515 = vsel %vm514, %v507, %v511
        %v516 = vsel %vm514, %v509, %v513
        %v517 = vsel %vm514, %v511, %v507
        %v518 = vsel %vm514, %v513, %v509
        %v519 = vlaneseq
        %v520 = vshrl.u32 %v519, 7
        %v521 = vsub.s32 1, %v520
        %v522 = vrot.slane %v475, %v521
        %v523 = vlaneseq
        %v524 = vshrl.u32 %v523, 7
        %v525 = vsub.s32 1, %v524
        %v526 = vrot.slane %v476, %v525
        %v527 = vmul.f32 %v517, %v522
        %v528 = vmul.f32 %v515, %v526
        %v529 = vmul.f32 %v518, %v522
        %v530 = vmul.f32 %v516, %v526
        %531 = vrot.lane.b32.xlu0 %v382, 15
        %v532 = vpop.permute.xlu0 %531
        %533 = vrot.lane.b32.xlu0 %v471, 15
        %v534 = vpop.permute.xlu0 %533
        %535 = vrot.lane.b32.xlu0 %v383, 15
        %v536 = vpop.permute.xlu0 %535
        %537 = vrot.lane.b32.xlu0 %v473, 15
        %v538 = vpop.permute.xlu0 %537
        %vm539 = vcmp.lt.s32.totalorder %v488, 15
        %v540 = vsel %vm539, %v532, %v536
        %v541 = vsel %vm539, %v534, %v538
        %v542 = vsel %vm539, %v536, %v532
        %v543 = vsel %vm539, %v538, %v534
        %v544 = vlaneseq
        %v545 = vshrl.u32 %v544, 7
        %v546 = vsub.s32 2, %v545
        %v547 = vrot.slane %v475, %v546
        %v548 = vlaneseq
        %v549 = vshrl.u32 %v548, 7
        %v550 = vsub.s32 2, %v549
        %v551 = vrot.slane %v476, %v550
        %v552 = vmul.f32 %v542, %v547
        %v553 = vmul.f32 %v540, %v551
        %v554 = vmul.f32 %v543, %v547
        %v555 = vmul.f32 %v541, %v551
        %556 = vrot.lane.b32.xlu0 %v382, 1
        %v557 = vpop.permute.xlu0 %556
        %558 = vrot.lane.b32.xlu0 %v471, 1
        %v559 = vpop.permute.xlu0 %558
        %560 = vrot.lane.b32.xlu0 %v383, 1
        %v561 = vpop.permute.xlu0 %560
        %562 = vrot.lane.b32.xlu0 %v473, 1
        %v563 = vpop.permute.xlu0 %562
        %vm564 = vcmp.lt.s32.totalorder %v488, 1
        %v565 = vsel %vm564, %v557, %v561
        %v566 = vsel %vm564, %v559, %v563
        %v567 = vsel %vm564, %v561, %v557
        %v568 = vsel %vm564, %v563, %v559
        %v569 = vlaneseq
        %v570 = vshrl.u32 %v569, 7
        %v571 = vsub.s32 3, %v570
        %v572 = vrot.slane %v475, %v571
        %v573 = vlaneseq
        %v574 = vshrl.u32 %v573, 7
        %v575 = vsub.s32 3, %v574
        %v576 = vrot.slane %v476, %v575
        %v577 = vmul.f32 %v567, %v572
        %v578 = vmul.f32 %v565, %v576
        %v579 = vmul.f32 %v568, %v572
        %v580 = vmul.f32 %v566, %v576
        %581 = vrot.lane.b32.xlu0 %v382, 127
        %v582 = vpop.permute.xlu0 %581
        %583 = vrot.lane.b32.xlu0 %v471, 127
        %v584 = vpop.permute.xlu0 %583
        %585 = vrot.lane.b32.xlu0 %v383, 127
        %v586 = vpop.permute.xlu0 %585
        %587 = vrot.lane.b32.xlu0 %v473, 127
        %v588 = vpop.permute.xlu0 %587
        %vm589 = vcmp.lt.s32.totalorder %v488, 127
        %v590 = vsel %vm589, %v582, %v586
        %v591 = vsel %vm589, %v584, %v588
        %v592 = vsel %vm589, %v586, %v582
        %v593 = vsel %vm589, %v588, %v584
        %v594 = vlaneseq
        %v595 = vshrl.u32 %v594, 7
        %v596 = vsub.s32 5, %v595
        %v597 = vrot.slane %v475, %v596
        %v598 = vlaneseq
        %v599 = vshrl.u32 %v598, 7
        %v600 = vsub.s32 5, %v599
        %v601 = vrot.slane %v476, %v600
        %v602 = vmul.f32 %v590, %v597
        %v603 = vmul.f32 %v592, %v601
        %v604 = vmul.f32 %v591, %v597
        %v605 = vmul.f32 %v593, %v601
        %606 = vrot.lane.b32.xlu0 %v382, 113
        %v607 = vpop.permute.xlu0 %606
        %608 = vrot.lane.b32.xlu0 %v471, 113
        %v609 = vpop.permute.xlu0 %608
        %610 = vrot.lane.b32.xlu0 %v383, 113
        %v611 = vpop.permute.xlu0 %610
        %612 = vrot.lane.b32.xlu0 %v473, 113
        %v613 = vpop.permute.xlu0 %612
        %vm614 = vcmp.lt.s32.totalorder %v488, 113
        %v615 = vsel %vm614, %v607, %v611
        %v616 = vsel %vm614, %v609, %v613
        %v617 = vsel %vm614, %v611, %v607
        %v618 = vsel %vm614, %v613, %v609
        %v619 = vlaneseq
        %v620 = vshrl.u32 %v619, 7
        %v621 = vsub.s32 6, %v620
        %v622 = vrot.slane %v475, %v621
        %v623 = vlaneseq
        %v624 = vshrl.u32 %v623, 7
        %v625 = vsub.s32 6, %v624
        %v626 = vrot.slane %v476, %v625
        %v627 = vmul.f32 %v615, %v622
        %v628 = vmul.f32 %v617, %v626
        %v629 = vmul.f32 %v616, %v622
        %v630 = vmul.f32 %v618, %v626
        %631 = vrot.lane.b32.xlu0 %v382, 112
        %v632 = vpop.permute.xlu0 %631
        %633 = vrot.lane.b32.xlu0 %v471, 112
        %v634 = vpop.permute.xlu0 %633
        %635 = vrot.lane.b32.xlu0 %v383, 112
        %v636 = vpop.permute.xlu0 %635
        %637 = vrot.lane.b32.xlu0 %v473, 112
        %v638 = vpop.permute.xlu0 %637
        %vm639 = vcmp.lt.s32.totalorder %v488, 112
        %v640 = vsel %vm639, %v632, %v636
        %v641 = vsel %vm639, %v634, %v638
        %v642 = vsel %vm639, %v636, %v632
        %v643 = vsel %vm639, %v638, %v634
        %v644 = vlaneseq
        %v645 = vshrl.u32 %v644, 7
        %v646 = vsub.s32 7, %v645
        %v647 = vrot.slane %v475, %v646
        %v648 = vlaneseq
        %v649 = vshrl.u32 %v648, 7
        %v650 = vsub.s32 7, %v649
        %v651 = vrot.slane %v476, %v650
        %v652 = vmul.f32 %v640, %v647
        %v653 = vmul.f32 %v642, %v651
        %v654 = vmul.f32 %v641, %v647
        %v655 = vmul.f32 %v643, %v651
        %656 = vrot.lane.b32.xlu0 %v382, 111
        %v657 = vpop.permute.xlu0 %656
        %658 = vrot.lane.b32.xlu0 %v471, 111
        %v659 = vpop.permute.xlu0 %658
        %660 = vrot.lane.b32.xlu0 %v383, 111
        %v661 = vpop.permute.xlu0 %660
        %662 = vrot.lane.b32.xlu0 %v473, 111
        %v663 = vpop.permute.xlu0 %662
        %vm664 = vcmp.lt.s32.totalorder %v488, 111
        %v665 = vsel %vm664, %v657, %v661
        %v666 = vsel %vm664, %v659, %v663
        %v667 = vsel %vm664, %v661, %v657
        %v668 = vsel %vm664, %v663, %v659
        %v669 = vlaneseq
        %v670 = vshrl.u32 %v669, 7
        %v671 = vsub.s32 0, %v670
        %v672 = vrot.slane %v477, %v671
        %v673 = vlaneseq
        %v674 = vshrl.u32 %v673, 7
        %v675 = vsub.s32 0, %v674
        %v676 = vrot.slane %v478, %v675
        %v677 = vmul.f32 %v665, %v672
        %v678 = vmul.f32 %v667, %v676
        %v679 = vmul.f32 %v666, %v672
        %v680 = vmul.f32 %v668, %v676
        %v681 = vld [vmem:[#allocation8] sm:$0xff]
        %v682 = vld [vmem:[#allocation8 + $0x8] sm:$0xff]
        %v683 = vld [vmem:[%s5] sm:$0xff]
        %685 = vset.pattern.permute.xlu0 0
        %686 = vperm.xlu0 %685, %v683
        %v687 = vpop.permute.xlu0 %686
        %vm689 = vcmask 130048
        %v691 = vsel %vm689, %v682, 0
        %693 = vmatprep.subr.mxu0 %v655
        %694 = vmatpush1.msra.mxu0 %v654
        %695 = vmatprep.subr.mxu0 %v653
        %696 = vmatpush1.msra.mxu0 %v652
        %697 = vmatprep.subr.mxu0 %v630
        %698 = vmatpush1.msra.mxu0 %v629
        %699 = vmatprep.subr.mxu0 %v628
        %700 = vmatpush1.msra.mxu0 %v627
        %701 = vmatprep.subr.mxu0 %v605
        %702 = vmatpush1.msra.mxu0 %v604
        %703 = vmatprep.subr.mxu0 %v603
        %704 = vmatpush1.msra.mxu0 %v602
        %705 = vmatprep.subr.mxu0 %v473
        %706 = vmatpush1.msra.mxu0 %v471
        %707 = vmatprep.subr.mxu0 %v383
        %708 = vmatpush1.msra.mxu0 %v382
        %709 = vmatprep.subr.mxu0 %v580
        %710 = vmatpush1.msra.mxu0 %v579
        %711 = vmatprep.subr.mxu0 %v578
        %712 = vmatpush1.msra.mxu0 %v577
        %713 = vmatprep.subr.mxu0 %v555
        %714 = vmatpush1.msra.mxu0 %v554
        %715 = vmatprep.subr.mxu0 %v553
        %716 = vmatpush1.msra.mxu0 %v552
        %717 = vmatprep.subr.mxu0 %v530
        %718 = vmatpush1.msra.mxu0 %v529
        %719 = vmatprep.subr.mxu0 %v528
        %720 = vmatpush1.msra.mxu0 %v527
        %721 = vmatprep.subr.mxu0 %v505
        %722 = vmatpush1.msra.mxu0 %v504
        %723 = vmatprep.subr.mxu0 %v503
        %724 = vmatpush1.msra.mxu0 %v502
        %725 = vmatprep.subr.mxu0 0.0
        %726 = vmatpush2.msra.mxu0 0.0
        %727 = vmatprep.subr.mxu0 0.0
        %728 = vmatpush2.msra.mxu0 0.0
        %729 = vmatprep.subr.mxu0 0.0
        %730 = vmatpush2.msra.mxu0 0.0
        %731 = vmatprep.subr.mxu0 0.0
        %732 = vmatpush2.msra.mxu0 0.0
        %733 = vmatprep.subr.mxu0 0.0
        %734 = vmatpush2.msra.mxu0 0.0
        %735 = vmatprep.subr.mxu0 0.0
        %736 = vmatpush2.msra.mxu0 0.0
        %737 = vmatprep.subr.mxu0 0.0
        %738 = vmatpush2.msra.mxu0 0.0
        %739 = vmatprep.subr.mxu0 0.0
        %740 = vmatpush2.msra.mxu0 0.0
        %741 = vmatprep.subr.mxu0 0.0
        %742 = vmatpush2.msra.mxu0 0.0
        %743 = vmatprep.subr.mxu0 0.0
        %744 = vmatpush2.msra.mxu0 0.0
        %745 = vmatprep.subr.mxu0 0.0
        %746 = vmatpush2.msra.mxu0 0.0
        %747 = vmatprep.subr.mxu0 0.0
        %748 = vmatpush2.msra.mxu0 0.0
        %749 = vmatprep.subr.mxu0 0.0
        %750 = vmatpush2.msra.mxu0 0.0
        %751 = vmatprep.subr.mxu0 0.0
        %752 = vmatpush2.msra.mxu0 0.0
        %753 = vmatprep.subr.mxu0 %v680
        %754 = vmatpush2.msra.mxu0 %v679
        %755 = vmatprep.subr.mxu0 %v678
        %756 = vmatpush2.msra.mxu0 %v677
        %757 = vmatprep.mubr.f32.mxu0 %v691
        %758 = vmatmul.mubr.f32.gmra.mxu0 %v681
        %v759 = vpop.f32.mrf.mxu0
        %v760 = vadd.f32 %v687, %v759
        %v761 = vpop.f32.mrf.mxu0
        %v762 = vadd.f32 %v687, %v761
        %763 = vdwg.mxu0
        %v764 = vmax.f32 %v760, 0.0
        %v765 = vmax.f32 %v762, 0.0
        %766 = vrot.lane.b32.xlu0 %v764, 17
        %v767 = vpop.permute.xlu0 %766
        %768 = vrot.lane.b32.xlu0 %v765, 17
        %v769 = vpop.permute.xlu0 %768
        %v770 = vsel %vm489, %v767, %v769
        %v771 = vsel %vm489, %v769, %v767
        %v772 = vmul.f32 %v771, %v497
        %v773 = vmul.f32 %v770, %v501
        %774 = vrot.lane.b32.xlu0 %v764, 16
        %v775 = vpop.permute.xlu0 %774
        %776 = vrot.lane.b32.xlu0 %v765, 16
        %v777 = vpop.permute.xlu0 %776
        %v778 = vsel %vm514, %v775, %v777
        %v779 = vsel %vm514, %v777, %v775
        %v780 = vmul.f32 %v779, %v522
        %v781 = vmul.f32 %v778, %v526
        %782 = vrot.lane.b32.xlu0 %v764, 15
        %v783 = vpop.permute.xlu0 %782
        %784 = vrot.lane.b32.xlu0 %v765, 15
        %v785 = vpop.permute.xlu0 %784
        %v786 = vsel %vm539, %v783, %v785
        %v787 = vsel %vm539, %v785, %v783
        %v788 = vmul.f32 %v787, %v547
        %v789 = vmul.f32 %v786, %v551
        %790 = vrot.lane.b32.xlu0 %v764, 1
        %v791 = vpop.permute.xlu0 %790
        %792 = vrot.lane.b32.xlu0 %v765, 1
        %v793 = vpop.permute.xlu0 %792
        %v794 = vsel %vm564, %v791, %v793
        %v795 = vsel %vm564, %v793, %v791
        %v796 = vmul.f32 %v795, %v572
        %v797 = vmul.f32 %v794, %v576
        %798 = vrot.lane.b32.xlu0 %v764, 127
        %v799 = vpop.permute.xlu0 %798
        %800 = vrot.lane.b32.xlu0 %v765, 127
        %v801 = vpop.permute.xlu0 %800
        %v802 = vsel %vm589, %v799, %v801
        %v803 = vsel %vm589, %v801, %v799
        %v804 = vmul.f32 %v802, %v597
        %v805 = vmul.f32 %v803, %v601
        %806 = vrot.lane.b32.xlu0 %v764, 113
        %v807 = vpop.permute.xlu0 %806
        %808 = vrot.lane.b32.xlu0 %v765, 113
        %v809 = vpop.permute.xlu0 %808
        %v810 = vsel %vm614, %v807, %v809
        %v811 = vsel %vm614, %v809, %v807
        %v812 = vmul.f32 %v810, %v622
        %v813 = vmul.f32 %v811, %v626
        %814 = vrot.lane.b32.xlu0 %v764, 112
        %v815 = vpop.permute.xlu0 %814
        %816 = vrot.lane.b32.xlu0 %v765, 112
        %v817 = vpop.permute.xlu0 %816
        %v818 = vsel %vm639, %v815, %v817
        %v819 = vsel %vm639, %v817, %v815
        %v820 = vmul.f32 %v818, %v647
        %v821 = vmul.f32 %v819, %v651
        %822 = vrot.lane.b32.xlu0 %v764, 111
        %v823 = vpop.permute.xlu0 %822
        %824 = vrot.lane.b32.xlu0 %v765, 111
        %v825 = vpop.permute.xlu0 %824
        %v826 = vsel %vm664, %v823, %v825
        %v827 = vsel %vm664, %v825, %v823
        %v828 = vmul.f32 %v826, %v672
        %v829 = vmul.f32 %v827, %v676
        %v830 = vld [vmem:[%s6] sm:$0xff]
        %v831 = vld [vmem:[%s7] sm:$0xff]
        %833 = vset.pattern.permute.xlu0 0
        %834 = vperm.xlu0 %833, %v831
        %v835 = vpop.permute.xlu0 %834
        %vm837 = vcmask 588800
        %v839 = vsel %vm837, %v830, 0
        %841 = vmatprep.subr.mxu0 0.0
        %842 = vmatpush1.msra.mxu0 0.0
        %843 = vmatprep.subr.mxu0 0.0
        %844 = vmatpush1.msra.mxu0 0.0
        %845 = vmatprep.subr.mxu0 0.0
        %846 = vmatpush1.msra.mxu0 0.0
        %847 = vmatprep.subr.mxu0 0.0
        %848 = vmatpush1.msra.mxu0 0.0
        %849 = vmatprep.subr.mxu0 0.0
        %850 = vmatpush1.msra.mxu0 0.0
        %851 = vmatprep.subr.mxu0 0.0
        %852 = vmatpush1.msra.mxu0 0.0
        %853 = vmatprep.subr.mxu0 0.0
        %854 = vmatpush1.msra.mxu0 0.0
        %855 = vmatprep.subr.mxu0 %v829
        %856 = vmatpush1.msra.mxu0 %v828
        %857 = vmatprep.subr.mxu0 %v821
        %858 = vmatpush1.msra.mxu0 %v820
        %859 = vmatprep.subr.mxu0 %v813
        %860 = vmatpush1.msra.mxu0 %v812
        %861 = vmatprep.subr.mxu0 %v805
        %862 = vmatpush1.msra.mxu0 %v804
        %863 = vmatprep.subr.mxu0 %v765
        %864 = vmatpush1.msra.mxu0 %v764
        %865 = vmatprep.subr.mxu0 %v797
        %866 = vmatpush1.msra.mxu0 %v796
        %867 = vmatprep.subr.mxu0 %v789
        %868 = vmatpush1.msra.mxu0 %v788
        %869 = vmatprep.subr.mxu0 %v781
        %870 = vmatpush1.msra.mxu0 %v780
        %871 = vmatprep.subr.mxu0 %v773
        %872 = vmatpush1.msra.mxu0 %v772
        %873 = vmatprep.subr.mxu0 0.0
        %874 = vmatpush2.msra.mxu0 0.0
        %875 = vmatprep.subr.mxu0 0.0
        %876 = vmatpush2.msra.mxu0 0.0
        %877 = vmatprep.subr.mxu0 0.0
        %878 = vmatpush2.msra.mxu0 0.0
        %879 = vmatprep.subr.mxu0 0.0
        %880 = vmatpush2.msra.mxu0 0.0
        %881 = vmatprep.subr.mxu0 0.0
        %882 = vmatpush2.msra.mxu0 0.0
        %883 = vmatprep.subr.mxu0 0.0
        %884 = vmatpush2.msra.mxu0 0.0
        %885 = vmatprep.subr.mxu0 0.0
        %886 = vmatpush2.msra.mxu0 0.0
        %887 = vmatprep.subr.mxu0 0.0
        %888 = vmatpush2.msra.mxu0 0.0
        %889 = vmatprep.subr.mxu0 0.0
        %890 = vmatpush2.msra.mxu0 0.0
        %891 = vmatprep.subr.mxu0 0.0
        %892 = vmatpush2.msra.mxu0 0.0
        %893 = vmatprep.subr.mxu0 0.0
        %894 = vmatpush2.msra.mxu0 0.0
        %895 = vmatprep.subr.mxu0 0.0
        %896 = vmatpush2.msra.mxu0 0.0
        %897 = vmatprep.subr.mxu0 0.0
        %898 = vmatpush2.msra.mxu0 0.0
        %899 = vmatprep.subr.mxu0 0.0
        %900 = vmatpush2.msra.mxu0 0.0
        %901 = vmatprep.subr.mxu0 0.0
        %902 = vmatpush2.msra.mxu0 0.0
        %903 = vmatprep.subr.mxu0 0.0
        %904 = vmatpush2.msra.mxu0 0.0
        %905 = vmatprep.mubr.f32.mxu0 0.0
        %906 = vmatmul.mubr.f32.gmra.mxu0 %v839
        %v907 = vpop.f32.mrf.mxu0
        %v908 = vadd.f32 %v835, %v907
        %v909 = vpop.f32.mrf.mxu0
        %v910 = vadd.f32 %v835, %v909
        %911 = vdwg.mxu0
        %v912 = vmax.f32 %v908, 0.0
        %v913 = vmax.f32 %v910, 0.0
        %914 = vst [vmem:[%s376] sm:$0xff] %v912
        %915 = vst [vmem:[%s376 + $0x8] sm:$0xff] %v913
        %s916 = sand.u32 %s213, 1
        %s917 = scalar_lea.sflag [#allocation4], %s916
        %s918 = sand.u32 %s213, 1
        %s919 = smul.addr %s918, 16
        %s920 = scalar_lea.vmem [#allocation10], %s919
        // Predicated region
        $region69: #{tpu_custom_call.1} parent=51 // pred_check
          %p921 = pneg %p223
        $region70: #{tpu_custom_call.1} parent=51 // pred_check_branch
          %923 = sbr.rel (%p921) target = $region72
        $region71: #{tpu_custom_call.1} parent=51 // pred_region
          %s925 = ssub.s32 256, 256
          %926 = vsyncadd %s917, %s925
          %s927 = smul.addr %s27, 2
          %s928 = smul.addr %s927, 128
          %s929 = scalar_lea.hbm %s8, %s928
          %s931 = sshll.u32 %s920, 4
          %s932 = int_to_ptr.vmem [resolvable:$true] %s931
          %934 = dma.vmem_to_hbm [thread:$0]  %s932, 256, %s929, %s917
        $region72: #{tpu_custom_call.1} parent=51 // pred_fallthru
          _
      $region52: #{tpu_custom_call.1} parent=5 // pred_fallthru
        _
      %p935 = scmp.le.s32.totalorder 2, %s22
      // Predicated region
      $region73: #{tpu_custom_call.1} parent=5 // pred_check
        %p936 = pneg %p935
      $region74: #{tpu_custom_call.1} parent=5 // pred_check_branch
        %938 = sbr.rel (%p936) target = $region76
      $region75: #{tpu_custom_call.1} parent=5 // pred_region
        %s939 = ssub.s32 %s22, 2
        // Predicated region
        $region77: #{tpu_custom_call.1} parent=75 // pred_check
          %p940 = pneg %p229
        $region78: #{tpu_custom_call.1} parent=75 // pred_check_branch
          %942 = sbr.rel (%p940) target = $region80
        $region79: #{tpu_custom_call.1} parent=75 // pred_region
          %s943 = sand.u32 %s214, 1
          %s944 = scalar_lea.sflag [#allocation4], %s943
          %s945 = sand.u32 %s214, 1
          %s946 = smul.addr %s945, 16
          %s947 = scalar_lea.vmem [#allocation10], %s946
          %948 = dma.done %s944, 256
        $region80: #{tpu_custom_call.1} parent=75 // pred_fallthru
          _
      $region76: #{tpu_custom_call.1} parent=5 // pred_fallthru
        _
    $region6: #{tpu_custom_call.1} parent=1 // loop_footer
      %s26 = sadd.s32 1, %s22
    $region7: #{tpu_custom_call.1} parent=1 // loop_footer_branch
      %21 = sbr.rel target = $region3
    $region8: #{tpu_custom_call.1} parent=1 // loop_exit
      _
    %949 = vsyncpa [#allocation3], 1
    %s950 = scalar_lea.sflag [#allocation3], 1
    %951 = vsyncpa %s950, 1
    %952 = vsyncpa [#allocation6], 1
    %953 = vsyncpa [#allocation9], 1
    %954 = vsyncpa [#allocation4], 1
    %s955 = scalar_lea.sflag [#allocation4], 1
    %956 = vsyncpa %s955, 1

</llo_original>
